<compile_context>
chip_gen: v5e
topology: v5e:2x2
jax: 0.10.0
libtpu: 0.0.40
codegen_flags: <defaults>
</compile_context>

<pallas_src>
import functools

import jax
import jax.numpy as jnp
from jax.experimental import pallas as pl
from jax.experimental.pallas import tpu as pltpu

EPS = 1e-06      # clamp for sigmoid(output), matches torch eps
SMOOTH = 0.01    # clamp for target, matches self.smooth
LANES = 128


def _wbce_kernel(x_ref, t_ref, partial_ref, *, weight, n_total, tile_rows,
                 lanes, needs_mask):
    i = pl.program_id(0)

    @pl.when(i == 0)
    def _():
        partial_ref[...] = jnp.zeros_like(partial_ref)

    x = x_ref[...].astype(jnp.float32)
    t = t_ref[...].astype(jnp.float32)

    # sigmoid + clamp (matches torch.sigmoid + torch.clamp(eps, 1-eps))
    p = 1.0 / (1.0 + jnp.exp(-x))
    p = jnp.clip(p, EPS, 1.0 - EPS)
    tc = jnp.clip(t, SMOOTH, 1.0 - SMOOTH)

    # WBCE(p, t) = -w * t * log(p) - (1 - t) * log(1 - p)
    loss = -(weight * tc * jnp.log(p) + (1.0 - tc) * jnp.log(1.0 - p))

    if needs_mask:
        # Zero out padded elements (only present when n_total isn't a multiple
        # of the padded slab size). Pure VPU work; skipped statically otherwise.
        row = jax.lax.broadcasted_iota(jnp.int32, (tile_rows, lanes), 0)
        lane = jax.lax.broadcasted_iota(jnp.int32, (tile_rows, lanes), 1)
        flat = (i * tile_rows + row) * lanes + lane
        loss = jnp.where(flat < n_total, loss, 0.0)

    # vreg-shaped accumulation: fold sublane groups with VPU adds; the tiny
    # cross-lane finish (sum of 8x128) happens in JAX outside the kernel.
    partial_ref[...] += loss.reshape(tile_rows // 8, 8, lanes).sum(axis=0)


def wbce_with_logit_loss(output, target, *, weight=1.0, ignore_index=None,
                         reduction="mean", max_tile_rows=1024):
    """Pallas TPU implementation of WBCEWithLogitLoss.forward."""
    assert output.shape[0] == target.shape[0], "batch size mismatch"
    assert output.shape == target.shape
    assert reduction in ("mean", "sum", "none")

    if ignore_index is not None:
        valid = (target != ignore_index).astype(output.dtype)
        output = output * valid
        target = target.astype(output.dtype) * valid

    n_total = output.size
    flat_x = output.reshape(-1)
    flat_t = target.reshape(-1)

    # Lane-dense layout: pad flat length up to a whole number of tiles of
    # (tile_rows, 128). Small problems (<= max_tile_rows rows) run as a single
    # grid step; big ones tile at max_tile_rows rows (512 KiB/input/buffer).
    rows_valid = -(-n_total // LANES)
    if rows_valid <= max_tile_rows:
        tile_rows = max(8, ((rows_valid + 7) // 8) * 8)
    else:
        tile_rows = max_tile_rows
    rows_padded = (-(-rows_valid // tile_rows)) * tile_rows
    pad = rows_padded * LANES - n_total
    if pad:
        flat_x = jnp.pad(flat_x, (0, pad))
        flat_t = jnp.pad(flat_t, (0, pad))

    x2d = flat_x.reshape(rows_padded, LANES)
    t2d = flat_t.reshape(rows_padded, LANES)
    grid = (rows_padded // tile_rows,)

    kernel = functools.partial(
        _wbce_kernel, weight=float(weight), n_total=n_total,
        tile_rows=tile_rows, lanes=LANES, needs_mask=pad > 0)

    partial = pl.pallas_call(
        kernel,
        out_shape=jax.ShapeDtypeStruct((8, LANES), jnp.float32),
        grid_spec=pltpu.PrefetchScalarGridSpec(
            num_scalar_prefetch=0,
            grid=grid,
            in_specs=[
                pl.BlockSpec((tile_rows, LANES), lambda i: (i, 0)),
                pl.BlockSpec((tile_rows, LANES), lambda i: (i, 0)),
            ],
            out_specs=pl.BlockSpec((8, LANES), lambda i: (0, 0)),
        ),
        compiler_params=pltpu.CompilerParams(
            dimension_semantics=("arbitrary",),
        ),
    )(x2d, t2d)

    total = jnp.sum(partial)
    if reduction == "mean":
        return total / jnp.float32(n_total)
    if reduction == "sum":
        return total
    # TODO(synk): reduction='none' needs the full per-element loss tensor; the
    # sum-reducing kernel above does not produce it.
    raise NotImplementedError("reduction='none' not supported by this kernel")


def _reference(output, target, weight=1.0):
    p = 1.0 / (1.0 + jnp.exp(-output))
    p = jnp.clip(p, EPS, 1.0 - EPS)
    t = jnp.clip(target, SMOOTH, 1.0 - SMOOTH)
    loss = -(weight * t * jnp.log(p) + (1.0 - t) * jnp.log(1.0 - p))
    return jnp.mean(loss)


if __name__ == "__main__":
    key = jax.random.PRNGKey(0)
    ko, kt = jax.random.split(key)
    # `output` are raw logits (no sigmoid applied by caller), `target` is {0,1},
    # NCHW (2, 4, 16, 16) as in the PyTorch module docstring.
    logits = jax.random.normal(ko, (2, 4, 16, 16), dtype=jnp.float32)
    target = (jax.random.uniform(kt, (2, 4, 16, 16)) > 0.5).astype(jnp.float32)

    loss = wbce_with_logit_loss(logits, target)            # default weight=1.0
    jax.block_until_ready(loss)
    ref = _reference(logits, target)
    assert jnp.allclose(loss, ref, rtol=1e-5, atol=1e-6), (loss, ref)

    loss_w = wbce_with_logit_loss(logits, target, weight=2.0)
    jax.block_until_ready(loss_w)
    ref_w = _reference(logits, target, weight=2.0)
    assert jnp.allclose(loss_w, ref_w, rtol=1e-5, atol=1e-6), (loss_w, ref_w)

    print("KERNEL_OK")
</pallas_src>

<mosaic_0001>
module attributes {stable_mosaic.version = 11 : i64} {
  func.func @_wbce_kernel(%arg0: i32, %arg1: memref<16x128xf32, #tpu.memory_space<vmem>>, %arg2: memref<16x128xf32, #tpu.memory_space<vmem>>, %arg3: memref<8x128xf32, #tpu.memory_space<vmem>>) attributes {dimension_semantics = [#tpu.dimension_semantics<arbitrary>], iteration_bounds = array<i64: 1>, scalar_prefetch = 0 : i64, scratch_operands = 0 : i64, tpu.core_type = #tpu.core_type<tc>, window_params = [{transform_indices = @transform_0, window_bounds = array<i64: 16, 128>}, {transform_indices = @transform_1, window_bounds = array<i64: 16, 128>}, {pipeline_mode = #tpu.pipeline_mode<synchronous>, transform_indices = @transform_2, window_bounds = array<i64: 8, 128>}]} {
    %c0_i32 = arith.constant 0 : i32
    %0 = arith.cmpi eq, %arg0, %c0_i32 : i32
    %1 = arith.extui %0 : i1 to i32
    %c0_i32_0 = arith.constant 0 : i32
    %2 = arith.cmpi ne, %1, %c0_i32_0 : i32
    scf.if %2 {
      %cst_19 = arith.constant 0.000000e+00 : f32
      %38 = vector.broadcast %cst_19 : f32 to vector<8x128xf32>
      %c0_20 = arith.constant 0 : index
      %c0_21 = arith.constant 0 : index
      %39 = vector.load %arg3[%c0_20, %c0_21] : memref<8x128xf32, #tpu.memory_space<vmem>>, vector<8x128xf32>
      tpu.vector_store %arg3[%c0_20, %c0_21], %38 {strides = array<i32>} : memref<8x128xf32, #tpu.memory_space<vmem>>, vector<8x128xf32>,
    } else {
    }
    %c0 = arith.constant 0 : index
    %c0_1 = arith.constant 0 : index
    %3 = vector.load %arg1[%c0, %c0_1] : memref<16x128xf32, #tpu.memory_space<vmem>>, vector<16x128xf32>
    %c0_2 = arith.constant 0 : index
    %c0_3 = arith.constant 0 : index
    %4 = vector.load %arg2[%c0_2, %c0_3] : memref<16x128xf32, #tpu.memory_space<vmem>>, vector<16x128xf32>
    %cst = arith.constant 0.000000e+00 : f32
    %5 = vector.broadcast %cst : f32 to vector<16x128xf32>
    %6 = arith.subf %5, %3 : vector<16x128xf32>
    %7 = math.exp %6 : vector<16x128xf32>
    %cst_4 = arith.constant 1.000000e+00 : f32
    %8 = vector.broadcast %cst_4 : f32 to vector<16x128xf32>
    %9 = arith.addf %8, %7 : vector<16x128xf32>
    %cst_5 = arith.constant 1.000000e+00 : f32
    %10 = vector.broadcast %cst_5 : f32 to vector<16x128xf32>
    %11 = arith.divf %10, %9 : vector<16x128xf32>
    %cst_6 = arith.constant 9.99999997E-7 : f32
    %cst_7 = arith.constant 0.999998986 : f32
    %12 = vector.broadcast %cst_6 : f32 to vector<16x128xf32>
    %13 = arith.maximumf %12, %11 : vector<16x128xf32>
    %14 = vector.broadcast %cst_7 : f32 to vector<16x128xf32>
    %15 = arith.minimumf %14, %13 : vector<16x128xf32>
    %cst_8 = arith.constant 0.00999999977 : f32
    %cst_9 = arith.constant 9.900000e-01 : f32
    %16 = vector.broadcast %cst_8 : f32 to vector<16x128xf32>
    %17 = arith.maximumf %16, %4 : vector<16x128xf32>
    %18 = vector.broadcast %cst_9 : f32 to vector<16x128xf32>
    %19 = arith.minimumf %18, %17 : vector<16x128xf32>
    %cst_10 = arith.constant 1.000000e+00 : f32
    %20 = vector.broadcast %cst_10 : f32 to vector<16x128xf32>
    %21 = arith.mulf %20, %19 : vector<16x128xf32>
    %22 = math.log %15 : vector<16x128xf32>
    %23 = arith.mulf %21, %22 : vector<16x128xf32>
    %cst_11 = arith.constant 1.000000e+00 : f32
    %24 = vector.broadcast %cst_11 : f32 to vector<16x128xf32>
    %25 = arith.subf %24, %19 : vector<16x128xf32>
    %cst_12 = arith.constant 1.000000e+00 : f32
    %26 = vector.broadcast %cst_12 : f32 to vector<16x128xf32>
    %27 = arith.subf %26, %15 : vector<16x128xf32>
    %28 = math.log %27 : vector<16x128xf32>
    %29 = arith.mulf %25, %28 : vector<16x128xf32>
    %30 = arith.addf %23, %29 : vector<16x128xf32>
    %cst_13 = arith.constant 0.000000e+00 : f32
    %31 = vector.broadcast %cst_13 : f32 to vector<16x128xf32>
    %32 = arith.subf %31, %30 : vector<16x128xf32>
    %c0_14 = arith.constant 0 : index
    %c0_15 = arith.constant 0 : index
    %33 = vector.load %arg3[%c0_14, %c0_15] : memref<8x128xf32, #tpu.memory_space<vmem>>, vector<8x128xf32>
    %34 = vector.shape_cast %32 : vector<16x128xf32> to vector<2x8x128xf32>
    %cst_16 = arith.constant dense<0.000000e+00> : vector<8x128xf32>
    %35 = vector.multi_reduction <add>, %34, %cst_16 [0] : vector<2x8x128xf32> to vector<8x128xf32>
    %36 = arith.addf %33, %35 : vector<8x128xf32>
    %c0_17 = arith.constant 0 : index
    %c0_18 = arith.constant 0 : index
    %37 = vector.load %arg3[%c0_17, %c0_18] : memref<8x128xf32, #tpu.memory_space<vmem>>, vector<8x128xf32>
    tpu.vector_store %arg3[%c0_17, %c0_18], %36 {strides = array<i32>} : memref<8x128xf32, #tpu.memory_space<vmem>>, vector<8x128xf32>,
    return
  }
  func.func @transform_0(%arg0: i32) -> (i32, i32) {
    %c0_i32 = arith.constant 0 : i32
    %c0_i32_0 = arith.constant 0 : i32
    return %arg0, %c0_i32 : i32, i32
  }
  func.func @transform_1(%arg0: i32) -> (i32, i32) {
    %c0_i32 = arith.constant 0 : i32
    %c0_i32_0 = arith.constant 0 : i32
    return %arg0, %c0_i32 : i32, i32
  }
  func.func @transform_2(%arg0: i32) -> (i32, i32) {
    %c0_i32 = arith.constant 0 : i32
    %c0_i32_0 = arith.constant 0 : i32
    %c0_i32_1 = arith.constant 0 : i32
    return %c0_i32, %c0_i32_0 : i32, i32
  }
}

</mosaic_0001>

<llo_original>
// kernel: tpu_custom_call.1
$region0: #{tpu_custom_call.1}
  #allocation0 [shape = 'u32[]', space=smem, size = 0x4, offset = 0x4, fixed_abs, tag = 'smem constant byte address 0x4 - core index']
  #allocation1 [shape = 'u32[72,128]{1,0:T(1,128)}', space=vmem, size = 0x9000, scoped, tag = 'internal scratch']
  %s0 = inlined_call_operand.hbm [shape: f32[16,128], index: 0, kind: input, shape index: {}]
  %s1 = inlined_call_operand.hbm [shape: f32[16,128], index: 1, kind: input, shape index: {}]
  %s2 = inlined_call_operand.hbm [shape: f32[8,128], index: 2, kind: output, shape index: {}]
  %s3 = sld [smem:[#allocation0]]
  $region30: #{tpu_custom_call.1} parent=0
    _
  %s5 = ssub.s32 1, %s3
  %s6 = scalar_select 0, %s5, %s3
  $region1: #{tpu_custom_call.1} parent=0
    #allocation2 [shape = 'u8[8192]{0}', space=vmem, size = 0x2000, scoped, tag = 'input window, operand 0, single buffered']
    #allocation3 [shape = 's32[1]{0}', space=sflag, size = 0x4, scoped, tag = 'scoped memory for tpu_custom_call.1']
    #allocation4 [shape = 's32[1]{0}', space=sflag, size = 0x4, scoped, tag = 'scoped memory for tpu_custom_call.1']
    #allocation5 [shape = 'u8[8192]{0}', space=vmem, size = 0x2000, scoped, tag = 'input window, operand 1, single buffered']
    #allocation6 [shape = 's32[1]{0}', space=sflag, size = 0x4, scoped, tag = 'scoped memory for tpu_custom_call.1']
    #allocation7 [shape = 'u8[4096]{0}', space=vmem, size = 0x1000, scoped, tag = 'output window, operand 0, single buffered']
    %7 = vsyncpa [#allocation3], 0
    %8 = vsyncpa [#allocation6], 0
    %9 = vsyncpa [#allocation4], 0
    // Predicated region
    $region2: #{tpu_custom_call.1} parent=1 // pred_check
      _
    $region3: #{tpu_custom_call.1} parent=1 // pred_check_branch
      %11 = sbr.rel (0) target = $region5
    $region4: #{tpu_custom_call.1} parent=1 // pred_region
      %13 = vsyncadd [#allocation3], 0
      %s14 = sshll.u32 %s0, 4
      %s15 = int_to_ptr.hbm [resolvable:$true] %s14
      %s16 = sshll.u32 [#allocation2], 4
      %s17 = int_to_ptr.vmem [resolvable:$true] %s16
      %22 = dma.hbm_to_vmem [thread:$0]  %s15, 256, %s17, [#allocation3], 128, 128, 8
    $region5: #{tpu_custom_call.1} parent=1 // pred_fallthru
      _
    // Predicated region
    $region6: #{tpu_custom_call.1} parent=1 // pred_check
      _
    $region7: #{tpu_custom_call.1} parent=1 // pred_check_branch
      %24 = sbr.rel (0) target = $region9
    $region8: #{tpu_custom_call.1} parent=1 // pred_region
      %26 = vsyncadd [#allocation6], 0
      %s27 = sshll.u32 %s1, 4
      %s28 = int_to_ptr.hbm [resolvable:$true] %s27
      %s29 = sshll.u32 [#allocation5], 4
      %s30 = int_to_ptr.vmem [resolvable:$true] %s29
      %35 = dma.hbm_to_vmem [thread:$0]  %s28, 256, %s30, [#allocation6], 128, 128, 8
    $region9: #{tpu_custom_call.1} parent=1 // pred_fallthru
      _
    // Predicated region
    $region10: #{tpu_custom_call.1} parent=1 // pred_check
      _
    $region11: #{tpu_custom_call.1} parent=1 // pred_check_branch
      %37 = sbr.rel (0) target = $region13
    $region12: #{tpu_custom_call.1} parent=1 // pred_region
      %39 = dma.done [#allocation3], 256
    $region13: #{tpu_custom_call.1} parent=1 // pred_fallthru
      _
    // Predicated region
    $region14: #{tpu_custom_call.1} parent=1 // pred_check
      _
    $region15: #{tpu_custom_call.1} parent=1 // pred_check_branch
      %41 = sbr.rel (0) target = $region17
    $region16: #{tpu_custom_call.1} parent=1 // pred_region
      %43 = dma.done [#allocation6], 256
    $region17: #{tpu_custom_call.1} parent=1 // pred_fallthru
      _
    %p44 = scmp.eq.s32.totalorder 0, 0
    // Predicated region
    $region18: #{tpu_custom_call.1} parent=1 // pred_check
      %p45 = pneg %p44
    $region19: #{tpu_custom_call.1} parent=1 // pred_check_branch
      %47 = sbr.rel (%p45) target = $region21
    $region20: #{tpu_custom_call.1} parent=1 // pred_region
      %48 = vst [vmem:[#allocation7] sm:$0xff] 0.0
    $region21: #{tpu_custom_call.1} parent=1 // pred_fallthru
      _
    %v49 = vld [vmem:[#allocation2] sm:$0xff]
    %v50 = vld [vmem:[#allocation2 + $0x8] sm:$0xff]
    %v51 = vld [vmem:[#allocation5] sm:$0xff]
    %v52 = vld [vmem:[#allocation5 + $0x8] sm:$0xff]
    %v53 = vsub.f32 0.0, %v49
    %v54 = vsub.f32 0.0, %v50
    %v55 = vmul.f32 %v53, 1.442695
    %v56 = vpow.pop %v55
    %v57 = vmul.f32 %v54, 1.442695
    %v58 = vpow.pop %v57
    %v59 = vadd.f32 %v56, 1.0
    %v60 = vadd.f32 %v58, 1.0
    %v61 = vrcp.pop %v59
    %v62 = vmul.f32 %v59, %v61
    %v63 = vsub.f32 1.0, %v62
    %v64 = vmul.f32 %v61, %v63
    %v65 = vadd.f32 %v61, %v64
    %vm66 = vweird.f32 %v59
    %vm67 = vweird.f32 %v61
    %vm68 = vmor %vm66, %vm67
    %v69 = vsel %vm68, %v61, %v65
    %v70 = vand.u32 2147483647, %v59
    %vm71 = vcmp.eq.f32.partialorder %v70, 8.507059e+37
    %v72 = vand.u32 %v59, 2147483648
    %v73 = vor.u32 1.1754944e-38, %v72
    %v74 = vsel %vm71, %v73, %v69
    %v75 = vmul.f32 1.0, %v74
    %v76 = vrcp.pop %v60
    %v77 = vmul.f32 %v60, %v76
    %v78 = vsub.f32 1.0, %v77
    %v79 = vmul.f32 %v76, %v78
    %v80 = vadd.f32 %v76, %v79
    %vm81 = vweird.f32 %v60
    %vm82 = vweird.f32 %v76
    %vm83 = vmor %vm81, %vm82
    %v84 = vsel %vm83, %v76, %v80
    %v85 = vand.u32 2147483647, %v60
    %vm86 = vcmp.eq.f32.partialorder %v85, 8.507059e+37
    %v87 = vand.u32 %v60, 2147483648
    %v88 = vor.u32 1.1754944e-38, %v87
    %v89 = vsel %vm86, %v88, %v84
    %v90 = vmul.f32 1.0, %v89
    %v91 = vmax.f32 %v75, 1e-06
    %v92 = vmax.f32 %v90, 1e-06
    %v93 = vmin.f32 %v91, 0.999999
    %v94 = vmin.f32 %v92, 0.999999
    %v95 = vmax.f32 %v51, 0.01
    %v96 = vmax.f32 %v52, 0.01
    %v97 = vmin.f32 %v95, 0.99
    %v98 = vmin.f32 %v96, 0.99
    %v99 = vlog2.pop %v93
    %v100 = vmul.f32 %v99, 0.6931472
    %v101 = vlog2.pop %v94
    %v102 = vmul.f32 %v101, 0.6931472
    %v103 = vmul.f32 %v97, %v100
    %v104 = vmul.f32 %v98, %v102
    %v105 = vsub.f32 1.0, %v97
    %v106 = vsub.f32 1.0, %v98
    %v107 = vsub.f32 1.0, %v93
    %v108 = vsub.f32 1.0, %v94
    %v109 = vlog2.pop %v107
    %v110 = vmul.f32 %v109, 0.6931472
    %v111 = vlog2.pop %v108
    %v112 = vmul.f32 %v111, 0.6931472
    %v113 = vmul.f32 %v105, %v110
    %v114 = vmul.f32 %v106, %v112
    %v115 = vadd.f32 %v103, %v113
    %v116 = vadd.f32 %v104, %v114
    %v117 = vsub.f32 0.0, %v115
    %v118 = vsub.f32 0.0, %v116
    %v119 = vld [vmem:[#allocation7] sm:$0xff]
    %v120 = vadd.f32 %v117, %v118
    %v121 = vadd.f32 %v119, %v120
    %122 = vst [vmem:[#allocation7] sm:$0xff] %v121
    // Predicated region
    $region22: #{tpu_custom_call.1} parent=1 // pred_check
      _
    $region23: #{tpu_custom_call.1} parent=1 // pred_check_branch
      %124 = sbr.rel (0) target = $region25
    $region24: #{tpu_custom_call.1} parent=1 // pred_region
      %126 = vsyncadd [#allocation4], 0
      %s128 = sshll.u32 [#allocation7], 4
      %s129 = int_to_ptr.vmem [resolvable:$true] %s128
      %s130 = sshll.u32 %s2, 4
      %s131 = int_to_ptr.hbm [resolvable:$true] %s130
      %133 = dma.vmem_to_hbm [thread:$0]  %s129, 128, %s131, [#allocation4]
    $region25: #{tpu_custom_call.1} parent=1 // pred_fallthru
      _
    // Predicated region
    $region26: #{tpu_custom_call.1} parent=1 // pred_check
      _
    $region27: #{tpu_custom_call.1} parent=1 // pred_check_branch
      %135 = sbr.rel (0) target = $region29
    $region28: #{tpu_custom_call.1} parent=1 // pred_region
      %137 = dma.done [#allocation4], 128
    $region29: #{tpu_custom_call.1} parent=1 // pred_fallthru
      _
    %138 = vsyncpa [#allocation3], 1
    %139 = vsyncpa [#allocation6], 1
    %140 = vsyncpa [#allocation4], 1

</llo_original>
